<compile_context>
chip_gen: v7x
topology: tpu7x:2x2x1
jax: 0.10.0
libtpu: 0.0.40
codegen_flags: <defaults>
</compile_context>

<pallas_src>
import jax
import jax.numpy as jnp
from jax.experimental import pallas as pl
from jax.experimental.pallas import tpu as pltpu

_LANE = 128     # TPU lane width (last dim of a vreg / MXU result width)
_SUBLANE = 8    # TPU sublane width (second-to-last dim)


def _round_up(x, m):
    return (x + m - 1) // m * m


def _pick_tile(total, unit, max_tile, min_tile):
    """Tile size (multiple of `unit`) minimizing padding of `total`; returns
    `total` itself (aligned) if it fits under `max_tile`."""
    total = _round_up(total, unit)
    if total <= max_tile:
        return total
    best_t, best_pad = unit, None
    t = (max_tile // unit) * unit
    while t >= max(min_tile, unit):
        pad = _round_up(total, t) - total
        if best_pad is None or pad < best_pad:
            best_t, best_pad = t, pad
            if pad == 0:
                break
        t -= unit
    return best_t


def _graphconv_proj_kernel(adj_ref, h_ref, wt_ref, b_ref, out_ref, acc_ref):
    """acc(f32) += A_tile @ H_tile over K; on last K: out = acc @ W^T + b,
    with W^T kept resident in f32 (no accumulator downcast)."""
    k = pl.program_id(1)

    @pl.when(k == 0)
    def _():
        acc_ref[...] = jnp.zeros_like(acc_ref)

    acc_ref[...] += jnp.dot(adj_ref[...], h_ref[...],
                            preferred_element_type=jnp.float32)

    @pl.when(k == pl.num_programs(1) - 1)
    def _():
        out_ref[...] = (
            jnp.dot(acc_ref[...], wt_ref[...],
                    preferred_element_type=jnp.float32)
            + b_ref[...]
        ).astype(out_ref.dtype)


def _graphconv_preproj_kernel(adj_ref, hw_ref, b_ref, out_ref):
    """Features already projected (HW = H @ W^T). Accumulate directly into the
    resident f32 output block: init with bias at k==0, += A_tile @ HW_tile."""
    k = pl.program_id(1)

    @pl.when(k == 0)
    def _():
        out_ref[...] = jnp.broadcast_to(b_ref[...], out_ref.shape)

    out_ref[...] += jnp.dot(adj_ref[...], hw_ref[...],
                            preferred_element_type=jnp.float32)


def build_weighted_adjacency(src, dst, edge_w, num_nodes, *,
                             dtype=jnp.bfloat16, rows_pad=None, cols_pad=None):
    """Scatter edge weights straight into a padded, compute-dtype adjacency
    buffer (adj[dst, src] += w).  graph_conv() can then consume it without any
    extra pad/cast copy of the O(N^2) array."""
    rows_pad = _round_up(num_nodes if rows_pad is None else rows_pad, _SUBLANE)
    cols_pad = _round_up(num_nodes if cols_pad is None else cols_pad, _LANE)
    adj = jnp.zeros((rows_pad, cols_pad), dtype)
    return adj.at[dst, src].add(edge_w.astype(dtype))


def graph_conv(adj, h, weight, bias, *, tm_max=1024, tk_max=2048,
               compute_dtype=jnp.bfloat16, n_dst=None, n_src=None):
    """
    adj    : [M, K] weighted adjacency, adj[dst, src] = summed edge weight.
             May already be zero-padded / in compute_dtype (no copy then).
    h      : [n_nodes, in_feats]       node features (f32)
    weight : [out_feats, in_feats]     PyTorch nn.Linear layout (f32)
    bias   : [out_feats]               (f32)
    n_dst / n_src : number of real nodes (default: adj shape).
    returns: [n_dst, out_feats] f32
    """
    M_a, K_a = adj.shape
    n_dst = M_a if n_dst is None else n_dst
    n_src = K_a if n_src is None else n_src
    n_nodes, in_feats = h.shape
    out_feats = weight.shape[0]

    # Lane-dense padding of the feature dims (unmasked stores, full MXU width).
    in_p = _round_up(in_feats, _LANE)
    out_p = _round_up(out_feats, _LANE)

    # Contract the dominant O(N^2) A-matmul against the smaller padded feature
    # dim: pre-project H by the linear layer first when out is narrower.
    pre_project = out_p < in_p
    feat = out_p if pre_project else in_p

    itemsize = jnp.dtype(compute_dtype).itemsize

    # Light VMEM guard (budgeted for v7x's 64 MiB): bound the X double-buffer
    # and accumulator rows when the feature dim is large.
    tk_max = min(tk_max, max(512, (8 * 2**20) // max(1, feat * itemsize)))
    tk_max = (tk_max // _LANE) * _LANE
    tm_max = min(tm_max, max(256, (8 * 2**20) // max(1, feat * 4)))
    tm_max = (tm_max // _SUBLANE) * _SUBLANE

    # Tiles that minimize padding beyond the mandatory (8, 128) alignment.
    m_pad0 = _round_up(M_a, _SUBLANE)
    k_pad0 = _round_up(K_a, _LANE)
    tm = _pick_tile(m_pad0, _SUBLANE, tm_max, 256)
    tk = _pick_tile(k_pad0, _LANE, tk_max, 512)
    m_pad = _round_up(m_pad0, tm)
    k_pad = _round_up(k_pad0, tk)

    # Prefer >= 2 independent row tiles so the "parallel" axis can actually
    # shard across the two TensorCores of a v7x chip.
    if m_pad // tm == 1 and tm >= 512 and tm % (2 * _SUBLANE) == 0:
        tm //= 2

    # Feed the adjacency straight through when already tile-aligned and in
    # compute_dtype — no extra read+write of the dominant HBM stream.
    if adj.shape == (m_pad, k_pad) and adj.dtype == compute_dtype:
        adj_p = adj
    else:
        adj_p = jnp.zeros((m_pad, k_pad), compute_dtype)
        adj_p = adj_p.at[:M_a, :K_a].set(adj.astype(compute_dtype))

    wt = weight.T.astype(jnp.float32)                        # [in_feats, out_feats]
    b_p = jnp.zeros((1, out_p), jnp.float32)
    b_p = b_p.at[0, :out_feats].set(bias.astype(jnp.float32))

    if pre_project:
        hw = jnp.dot(h.astype(jnp.float32), wt,
                     precision=jax.lax.Precision.HIGHEST)    # tiny O(N*in*out)
        x_p = jnp.zeros((k_pad, feat), compute_dtype)
        x_p = x_p.at[:n_nodes, :out_feats].set(hw.astype(compute_dtype))
        kernel = _graphconv_preproj_kernel
        in_specs = [
            pl.BlockSpec((tm, tk), lambda i, k: (i, k)),      # A tile (streamed)
            pl.BlockSpec((tk, feat), lambda i, k: (k, 0)),    # (H @ W^T) tile
            pl.BlockSpec((1, out_p), lambda i, k: (0, 0)),    # bias (resident)
        ]
        args = (adj_p, x_p, b_p)
        scratch_shapes = []                                   # accumulate in out_ref
    else:
        x_p = jnp.zeros((k_pad, feat), compute_dtype)
        x_p = x_p.at[:n_nodes, :in_feats].set(h.astype(compute_dtype))
        wt_p = jnp.zeros((in_p, out_p), jnp.float32)          # keep f32 (tiny)
        wt_p = wt_p.at[:in_feats, :out_feats].set(wt)
        kernel = _graphconv_proj_kernel
        in_specs = [
            pl.BlockSpec((tm, tk), lambda i, k: (i, k)),        # A tile (streamed)
            pl.BlockSpec((tk, feat), lambda i, k: (k, 0)),      # H tile
            pl.BlockSpec((in_p, out_p), lambda i, k: (0, 0)),   # W^T f32 (resident)
            pl.BlockSpec((1, out_p), lambda i, k: (0, 0)),      # bias (resident)
        ]
        args = (adj_p, x_p, wt_p, b_p)
        scratch_shapes = [pltpu.VMEM((tm, feat), jnp.float32)]

    grid = (m_pad // tm, k_pad // tk)

    # VMEM budget: 2xA + 2xX double-buffers, 2x out, (+acc, +W^T), capped well
    # under v7x's 64 MiB physical VMEM.
    vmem_est = (2 * tm * tk * itemsize + 2 * tk * feat * itemsize
                + 2 * tm * out_p * 4 + 2 * out_p * 4)
    if not pre_project:
        vmem_est += tm * feat * 4 + in_p * out_p * 4
    vmem_limit = int(min(48 * 2**20, max(32 * 2**20, vmem_est * 5 // 4)))

    out_padded = pl.pallas_call(
        kernel,
        out_shape=jax.ShapeDtypeStruct((m_pad, out_p), jnp.float32),
        grid_spec=pltpu.PrefetchScalarGridSpec(
            num_scalar_prefetch=0,
            grid=grid,
            in_specs=in_specs,
            # Same output block across K -> accumulator-resident in VMEM.
            out_specs=pl.BlockSpec((tm, out_p), lambda i, k: (i, 0)),
            scratch_shapes=scratch_shapes,
        ),
        compiler_params=pltpu.CompilerParams(
            # Row tiles independent -> "parallel"; K carries the accumulator ->
            # "arbitrary" (reduction axis last).
            dimension_semantics=("parallel", "arbitrary"),
            vmem_limit_bytes=vmem_limit,
        ),
    )(*args)

    return out_padded[:n_dst, :out_feats]


def reference(adj, h, weight, bias):
    agg = jnp.dot(adj, h, precision=jax.lax.Precision.HIGHEST)
    return jnp.dot(agg, weight.T, precision=jax.lax.Precision.HIGHEST) + bias


def _rand_graph(key, n, in_feats, out_feats, density=0.08):
    k_a, k_w, k_h, k_lw, k_lb = jax.random.split(key, 5)
    mask = (jax.random.uniform(k_a, (n, n)) < density).astype(jnp.float32)
    adj = mask * jax.random.uniform(k_w, (n, n), dtype=jnp.float32)
    h = jax.random.normal(k_h, (n, in_feats), dtype=jnp.float32)
    bound = 1.0 / jnp.sqrt(jnp.float32(in_feats))
    weight = jax.random.uniform(k_lw, (out_feats, in_feats),
                                minval=-bound, maxval=bound, dtype=jnp.float32)
    bias = jax.random.uniform(k_lb, (out_feats,),
                              minval=-bound, maxval=bound, dtype=jnp.float32)
    return adj, h, weight, bias


if __name__ == "__main__":
    key = jax.random.PRNGKey(0)
    k1, k2, k3 = jax.random.split(key, 3)

    # ---- Test 1: tiny graph mirroring the original module example ----------
    N, in_feats, out_feats = 8, 4, 8
    src = jnp.array([0, 1, 2, 3, 4, 5, 6, 0, 2], dtype=jnp.int32)
    dst = jnp.array([1, 2, 3, 4, 5, 6, 7, 3, 5], dtype=jnp.int32)
    k_e, k_h, k_w, k_b = jax.random.split(k1, 4)
    edge_w = jax.random.uniform(k_e, (src.shape[0],), dtype=jnp.float32)
    h1 = jax.random.normal(k_h, (N, in_feats), dtype=jnp.float32)
    bound = 1.0 / jnp.sqrt(jnp.float32(in_feats))
    w1 = jax.random.uniform(k_w, (out_feats, in_feats),
                            minval=-bound, maxval=bound, dtype=jnp.float32)
    b1 = jax.random.uniform(k_b, (out_feats,),
                            minval=-bound, maxval=bound, dtype=jnp.float32)

    adj1_dense = jnp.zeros((N, N), jnp.float32).at[dst, src].add(edge_w)
    ref1 = reference(adj1_dense, h1, w1, b1)

    # f32 path: adjacency built already padded + in compute dtype (no copy).
    adj1_f32 = build_weighted_adjacency(src, dst, edge_w, N, dtype=jnp.float32)
    out1 = jax.block_until_ready(
        graph_conv(adj1_f32, h1, w1, b1, compute_dtype=jnp.float32,
                   n_dst=N, n_src=N))
    assert out1.shape == (N, out_feats)
    assert jnp.allclose(out1, ref1, atol=1e-5, rtol=1e-5), "test1 f32 mismatch"

    # bf16 default path (bf16 A/H streams, f32 accumulation + f32 projection).
    adj1_bf16 = build_weighted_adjacency(src, dst, edge_w, N, dtype=jnp.bfloat16)
    out1_bf16 = jax.block_until_ready(
        graph_conv(adj1_bf16, h1, w1, b1, n_dst=N, n_src=N))
    assert jnp.allclose(out1_bf16, ref1, atol=5e-2, rtol=5e-2), "test1 bf16 mismatch"

    # ---- Test 2: multi-row-tile M, projection after aggregation ------------
    adj2, h2, w2, b2 = _rand_graph(k2, n=640, in_feats=64, out_feats=96)
    ref2 = reference(adj2, h2, w2, b2)

    out2 = jax.block_until_ready(
        graph_conv(adj2, h2, w2, b2, compute_dtype=jnp.float32))
    assert out2.shape == (640, 96)
    assert jnp.allclose(out2, ref2, atol=1e-4, rtol=1e-4), "test2 f32 mismatch"

    # bf16 default, adjacency pre-cast so the kernel gets it copy-free; compare
    # against a reference computed on the same bf16-rounded inputs.
    adj2_bf16 = adj2.astype(jnp.bfloat16)
    out2_bf16 = jax.block_until_ready(graph_conv(adj2_bf16, h2, w2, b2))
    ref2_q = reference(adj2_bf16.astype(jnp.float32),
                       h2.astype(jnp.bfloat16).astype(jnp.float32), w2, b2)
    assert jnp.allclose(out2_bf16, ref2_q, atol=2e-3, rtol=2e-3), "test2 bf16 mismatch"

    # ---- Test 3: pre-projection path (out_feats padded < in_feats padded) --
    adj3, h3, w3, b3 = _rand_graph(k3, n=384, in_feats=200, out_feats=16)
    out3 = jax.block_until_ready(
        graph_conv(adj3, h3, w3, b3, compute_dtype=jnp.float32))
    ref3 = reference(adj3, h3, w3, b3)
    assert out3.shape == (384, 16)
    assert jnp.allclose(out3, ref3, atol=1e-4, rtol=1e-4), "test3 mismatch"

    print("KERNEL_OK")
</pallas_src>

<mosaic_0001>
module attributes {stable_mosaic.version = 11 : i64} {
  func.func @_graphconv_proj_kernel(%arg0: i32, %arg1: i32, %arg2: memref<8x128xf32, #tpu.memory_space<vmem>>, %arg3: memref<128x128xf32, #tpu.memory_space<vmem>>, %arg4: memref<128x128xf32, #tpu.memory_space<vmem>>, %arg5: memref<1x128xf32, #tpu.memory_space<vmem>>, %arg6: memref<8x128xf32, #tpu.memory_space<vmem>>, %arg7: memref<8x128xf32, #tpu.memory_space<vmem>>) attributes {dimension_semantics = [#tpu.dimension_semantics<parallel>, #tpu.dimension_semantics<arbitrary>], iteration_bounds = array<i64: 1, 1>, scalar_prefetch = 0 : i64, scratch_operands = 1 : i64, tpu.core_type = #tpu.core_type<tc>, window_params = [{transform_indices = @transform_0, window_bounds = array<i64: 8, 128>}, {transform_indices = @transform_1, window_bounds = array<i64: 128, 128>}, {pipeline_mode = #tpu.pipeline_mode<synchronous>, transform_indices = @transform_2, window_bounds = array<i64: 128, 128>}, {pipeline_mode = #tpu.pipeline_mode<synchronous>, transform_indices = @transform_3, window_bounds = array<i64: 1, 128>}, {transform_indices = @transform_4, window_bounds = array<i64: 8, 128>}]} {
    %c0_i32 = arith.constant 0 : i32
    %0 = arith.cmpi eq, %arg1, %c0_i32 : i32
    %1 = arith.extui %0 : i1 to i32
    %c0_i32_0 = arith.constant 0 : i32
    %2 = arith.cmpi ne, %1, %c0_i32_0 : i32
    scf.if %2 {
      %cst_10 = arith.constant 0.000000e+00 : f32
      %12 = vector.broadcast %cst_10 : f32 to vector<8x128xf32>
      %c0_11 = arith.constant 0 : index
      %c0_12 = arith.constant 0 : index
      %13 = vector.load %arg7[%c0_11, %c0_12] : memref<8x128xf32, #tpu.memory_space<vmem>>, vector<8x128xf32>
      tpu.vector_store %arg7[%c0_11, %c0_12], %12 {strides = array<i32>} : memref<8x128xf32, #tpu.memory_space<vmem>>, vector<8x128xf32>,
    } else {
    }
    %c0 = arith.constant 0 : index
    %c0_1 = arith.constant 0 : index
    %3 = vector.load %arg7[%c0, %c0_1] : memref<8x128xf32, #tpu.memory_space<vmem>>, vector<8x128xf32>
    %c0_2 = arith.constant 0 : index
    %c0_3 = arith.constant 0 : index
    %4 = vector.load %arg2[%c0_2, %c0_3] : memref<8x128xf32, #tpu.memory_space<vmem>>, vector<8x128xf32>
    %c0_4 = arith.constant 0 : index
    %c0_5 = arith.constant 0 : index
    %5 = vector.load %arg3[%c0_4, %c0_5] : memref<128x128xf32, #tpu.memory_space<vmem>>, vector<128x128xf32>
    %cst = arith.constant dense<0.000000e+00> : vector<8x128xf32>
    %6 = tpu.matmul %4, %5, %cst {dimension_numbers = #tpu.dot_dimension_numbers<[1], [0], [0], [1], [0, 0, 1, 1], [], []>} : vector<8x128xf32>, vector<128x128xf32>, vector<8x128xf32> -> vector<8x128xf32>
    %7 = arith.addf %3, %6 : vector<8x128xf32>
    %c0_6 = arith.constant 0 : index
    %c0_7 = arith.constant 0 : index
    %8 = vector.load %arg7[%c0_6, %c0_7] : memref<8x128xf32, #tpu.memory_space<vmem>>, vector<8x128xf32>
    tpu.vector_store %arg7[%c0_6, %c0_7], %7 {strides = array<i32>} : memref<8x128xf32, #tpu.memory_space<vmem>>, vector<8x128xf32>,
    %c0_i32_8 = arith.constant 0 : i32
    %9 = arith.cmpi eq, %arg1, %c0_i32_8 : i32
    %10 = arith.extui %9 : i1 to i32
    %c0_i32_9 = arith.constant 0 : i32
    %11 = arith.cmpi ne, %10, %c0_i32_9 : i32
    scf.if %11 {
      %c0_10 = arith.constant 0 : index
      %c0_11 = arith.constant 0 : index
      %12 = vector.load %arg7[%c0_10, %c0_11] : memref<8x128xf32, #tpu.memory_space<vmem>>, vector<8x128xf32>
      %c0_12 = arith.constant 0 : index
      %c0_13 = arith.constant 0 : index
      %13 = vector.load %arg4[%c0_12, %c0_13] : memref<128x128xf32, #tpu.memory_space<vmem>>, vector<128x128xf32>
      %cst_14 = arith.constant dense<0.000000e+00> : vector<8x128xf32>
      %14 = tpu.matmul %12, %13, %cst_14 {dimension_numbers = #tpu.dot_dimension_numbers<[1], [0], [0], [1], [0, 0, 1, 1], [], []>} : vector<8x128xf32>, vector<128x128xf32>, vector<8x128xf32> -> vector<8x128xf32>
      %c0_15 = arith.constant 0 : index
      %c0_16 = arith.constant 0 : index
      %15 = vector.load %arg5[%c0_15, %c0_16] : memref<1x128xf32, #tpu.memory_space<vmem>>, vector<1x128xf32>
      %16 = vector.broadcast %15 : vector<1x128xf32> to vector<8x128xf32>
      %17 = arith.addf %14, %16 : vector<8x128xf32>
      %c0_17 = arith.constant 0 : index
      %c0_18 = arith.constant 0 : index
      %18 = vector.load %arg6[%c0_17, %c0_18] : memref<8x128xf32, #tpu.memory_space<vmem>>, vector<8x128xf32>
      tpu.vector_store %arg6[%c0_17, %c0_18], %17 {strides = array<i32>} : memref<8x128xf32, #tpu.memory_space<vmem>>, vector<8x128xf32>,
    } else {
    }
    return
  }
  func.func @transform_0(%arg0: i32, %arg1: i32) -> (i32, i32) {
    %c0_i32 = arith.constant 0 : i32
    return %arg0, %arg1 : i32, i32
  }
  func.func @transform_1(%arg0: i32, %arg1: i32) -> (i32, i32) {
    %c0_i32 = arith.constant 0 : i32
    %c0_i32_0 = arith.constant 0 : i32
    return %arg1, %c0_i32 : i32, i32
  }
  func.func @transform_2(%arg0: i32, %arg1: i32) -> (i32, i32) {
    %c0_i32 = arith.constant 0 : i32
    %c0_i32_0 = arith.constant 0 : i32
    %c0_i32_1 = arith.constant 0 : i32
    return %c0_i32, %c0_i32_0 : i32, i32
  }
  func.func @transform_3(%arg0: i32, %arg1: i32) -> (i32, i32) {
    %c0_i32 = arith.constant 0 : i32
    %c0_i32_0 = arith.constant 0 : i32
    %c0_i32_1 = arith.constant 0 : i32
    return %c0_i32, %c0_i32_0 : i32, i32
  }
  func.func @transform_4(%arg0: i32, %arg1: i32) -> (i32, i32) {
    %c0_i32 = arith.constant 0 : i32
    %c0_i32_0 = arith.constant 0 : i32
    return %arg0, %c0_i32 : i32, i32
  }
}

</mosaic_0001>

<llo_original>
// kernel: tpu_custom_call.1
$region0: #{tpu_custom_call.1}
  #allocation0 [shape = 'u32[]', space=smem, size = 0x4, offset = 0x4, fixed_abs, tag = 'smem constant byte address 0x4 - core index']
  #allocation1 [shape = 'u32[144,128]{1,0:T(1,128)}', space=vmem, size = 0x12000, scoped, tag = 'internal scratch']
  #allocation2 [shape = 'f32[8,128]{1,0:T(8,128)}', space=vmem, size = 0x1000, scoped, tag = 'scratch operand']
  %s0 = inlined_call_operand.hbm [shape: f32[8,128], index: 0, kind: input, shape index: {}]
  %s1 = inlined_call_operand.hbm [shape: f32[128,128], index: 1, kind: input, shape index: {}]
  %s2 = inlined_call_operand.hbm [shape: f32[128,128], index: 2, kind: input, shape index: {}]
  %s3 = inlined_call_operand.vmem [shape: f32[1,128], index: 3, kind: input, shape index: {}]
  %s4 = inlined_call_operand.hbm [shape: f32[8,128], index: 4, kind: output, shape index: {}]
  %s5 = sld [smem:[#allocation0]]
  $region46: #{tpu_custom_call.1} parent=0
    _
  %s7 = ssub.s32 1, %s5
  %s8 = scalar_select 0, %s7, %s5
  $region1: #{tpu_custom_call.1} parent=0
    #allocation3 [shape = 'u8[4096]{0}', space=vmem, size = 0x1000, scoped, tag = 'input window, operand 0, single buffered']
    #allocation4 [shape = 's32[1]{0}', space=sflag, size = 0x4, scoped, tag = 'scoped memory for tpu_custom_call.1']
    #allocation5 [shape = 's32[1]{0}', space=sflag, size = 0x4, scoped, tag = 'scoped memory for tpu_custom_call.1']
    #allocation6 [shape = 'u8[65536]{0}', space=vmem, size = 0x10000, scoped, tag = 'input window, operand 1, single buffered']
    #allocation7 [shape = 's32[1]{0}', space=sflag, size = 0x4, scoped, tag = 'scoped memory for tpu_custom_call.1']
    #allocation8 [shape = 'u8[65536]{0}', space=vmem, size = 0x10000, scoped, tag = 'input window, operand 2, single buffered']
    #allocation9 [shape = 'u8[4096]{0}', space=vmem, size = 0x1000, scoped, tag = 'output window, operand 0, single buffered']
    %9 = vsyncpa [#allocation4], 0
    %10 = vsyncpa [#allocation7], 0
    %11 = vsyncpa [#allocation5], 0
    // Predicated region
    $region2: #{tpu_custom_call.1} parent=1 // pred_check
      _
    $region3: #{tpu_custom_call.1} parent=1 // pred_check_branch
      %13 = sbr.rel (0) target = $region5
    $region4: #{tpu_custom_call.1} parent=1 // pred_region
      %s15 = ssub.s32 128, 128
      %16 = vsyncadd [#allocation4], %s15
      %s18 = sshll.u32 [#allocation3], 4
      %s19 = int_to_ptr.vmem [resolvable:$true] %s18
      %21 = dma.hbm_to_vmem [thread:$0]  %s0, 128, %s19, [#allocation4]
    $region5: #{tpu_custom_call.1} parent=1 // pred_fallthru
      _
    // Predicated region
    $region6: #{tpu_custom_call.1} parent=1 // pred_check
      _
    $region7: #{tpu_custom_call.1} parent=1 // pred_check_branch
      %23 = sbr.rel (0) target = $region9
    $region8: #{tpu_custom_call.1} parent=1 // pred_region
      %s25 = ssub.s32 2048, 2048
      %26 = vsyncadd [#allocation7], %s25
      %s27 = sshll.u32 [#allocation6], 4
      %s28 = int_to_ptr.vmem [resolvable:$true] %s27
      %33 = dma.hbm_to_vmem [thread:$0]  %s1, 2048, %s28, [#allocation7], 128, 128, 8
    $region9: #{tpu_custom_call.1} parent=1 // pred_fallthru
      _
    // Predicated region
    $region10: #{tpu_custom_call.1} parent=1 // pred_check
      _
    $region11: #{tpu_custom_call.1} parent=1 // pred_check_branch
      %35 = sbr.rel (0) target = $region13
    $region12: #{tpu_custom_call.1} parent=1 // pred_region
      %s37 = ssub.s32 2048, 2048
      %38 = vsyncadd [#allocation7], %s37
      %s39 = sshll.u32 [#allocation8], 4
      %s40 = int_to_ptr.vmem [resolvable:$true] %s39
      %45 = dma.hbm_to_vmem [thread:$0]  %s2, 2048, %s40, [#allocation7], 128, 128, 8
    $region13: #{tpu_custom_call.1} parent=1 // pred_fallthru
      _
    // Predicated region
    $region14: #{tpu_custom_call.1} parent=1 // pred_check
      _
    $region15: #{tpu_custom_call.1} parent=1 // pred_check_branch
      %47 = sbr.rel (0) target = $region17
    $region16: #{tpu_custom_call.1} parent=1 // pred_region
      _
    $region17: #{tpu_custom_call.1} parent=1 // pred_fallthru
      _
    // Predicated region
    $region18: #{tpu_custom_call.1} parent=1 // pred_check
      _
    $region19: #{tpu_custom_call.1} parent=1 // pred_check_branch
      %49 = sbr.rel (0) target = $region21
    $region20: #{tpu_custom_call.1} parent=1 // pred_region
      %50 = dma.done [#allocation4], 128
    $region21: #{tpu_custom_call.1} parent=1 // pred_fallthru
      _
    // Predicated region
    $region22: #{tpu_custom_call.1} parent=1 // pred_check
      _
    $region23: #{tpu_custom_call.1} parent=1 // pred_check_branch
      %52 = sbr.rel (0) target = $region25
    $region24: #{tpu_custom_call.1} parent=1 // pred_region
      %53 = dma.done [#allocation7], 2048
    $region25: #{tpu_custom_call.1} parent=1 // pred_fallthru
      _
    // Predicated region
    $region26: #{tpu_custom_call.1} parent=1 // pred_check
      _
    $region27: #{tpu_custom_call.1} parent=1 // pred_check_branch
      %55 = sbr.rel (0) target = $region29
    $region28: #{tpu_custom_call.1} parent=1 // pred_region
      %56 = dma.done [#allocation7], 2048
    $region29: #{tpu_custom_call.1} parent=1 // pred_fallthru
      _
    %p57 = scmp.eq.s32.totalorder 0, 0
    // Predicated region
    $region30: #{tpu_custom_call.1} parent=1 // pred_check
      %p58 = pneg %p57
    $region31: #{tpu_custom_call.1} parent=1 // pred_check_branch
      %60 = sbr.rel (%p58) target = $region33
    $region32: #{tpu_custom_call.1} parent=1 // pred_region
      %61 = vst [vmem:[#allocation2] sm:$0xff] 0.0
    $region33: #{tpu_custom_call.1} parent=1 // pred_fallthru
      _
    %v62 = vld [vmem:[#allocation2] sm:$0xff]
    %v63 = vld [vmem:[#allocation3] sm:$0xff]
    %v64 = vld [vmem:[#allocation6] sm:$0xff]
    %v65 = vld [vmem:[#allocation6 + $0x8] sm:$0xff]
    %v66 = vld [vmem:[#allocation6 + $0x10] sm:$0xff]
    %v67 = vld [vmem:[#allocation6 + $0x18] sm:$0xff]
    %v68 = vld [vmem:[#allocation6 + $0x20] sm:$0xff]
    %v69 = vld [vmem:[#allocation6 + $0x28] sm:$0xff]
    %v70 = vld [vmem:[#allocation6 + $0x30] sm:$0xff]
    %v71 = vld [vmem:[#allocation6 + $0x38] sm:$0xff]
    %v72 = vld [vmem:[#allocation6 + $0x40] sm:$0xff]
    %v73 = vld [vmem:[#allocation6 + $0x48] sm:$0xff]
    %v74 = vld [vmem:[#allocation6 + $0x50] sm:$0xff]
    %v75 = vld [vmem:[#allocation6 + $0x58] sm:$0xff]
    %v76 = vld [vmem:[#allocation6 + $0x60] sm:$0xff]
    %v77 = vld [vmem:[#allocation6 + $0x68] sm:$0xff]
    %v78 = vld [vmem:[#allocation6 + $0x70] sm:$0xff]
    %v79 = vld [vmem:[#allocation6 + $0x78] sm:$0xff]
    %80 = vmatprep.subr.mxu0 0.0
    %81 = vmatpush1.msra.mxu0 %v64
    %82 = vmatprep.subr.mxu0 0.0
    %83 = vmatpush1.msra.mxu0 %v65
    %84 = vmatprep.subr.mxu0 0.0
    %85 = vmatpush1.msra.mxu0 %v66
    %86 = vmatprep.subr.mxu0 0.0
    %87 = vmatpush1.msra.mxu0 %v67
    %88 = vmatprep.subr.mxu0 0.0
    %89 = vmatpush1.msra.mxu0 %v68
    %90 = vmatprep.subr.mxu0 0.0
    %91 = vmatpush1.msra.mxu0 %v69
    %92 = vmatprep.subr.mxu0 0.0
    %93 = vmatpush1.msra.mxu0 %v70
    %94 = vmatprep.subr.mxu0 0.0
    %95 = vmatpush1.msra.mxu0 %v71
    %96 = vmatprep.subr.mxu0 0.0
    %97 = vmatpush1.msra.mxu0 %v72
    %98 = vmatprep.subr.mxu0 0.0
    %99 = vmatpush1.msra.mxu0 %v73
    %100 = vmatprep.subr.mxu0 0.0
    %101 = vmatpush1.msra.mxu0 %v74
    %102 = vmatprep.subr.mxu0 0.0
    %103 = vmatpush1.msra.mxu0 %v75
    %104 = vmatprep.subr.mxu0 0.0
    %105 = vmatpush1.msra.mxu0 %v76
    %106 = vmatprep.subr.mxu0 0.0
    %107 = vmatpush1.msra.mxu0 %v77
    %108 = vmatprep.subr.mxu0 0.0
    %109 = vmatpush1.msra.mxu0 %v78
    %110 = vmatprep.subr.mxu0 0.0
    %111 = vmatpush1.msra.mxu0 %v79
    %112 = vmatprep.subr.mxu0 0.0
    %113 = vmatpush1.msra.mxu0 0.0
    %114 = vmatprep.subr.mxu0 0.0
    %115 = vmatpush1.msra.mxu0 0.0
    %116 = vmatprep.subr.mxu0 0.0
    %117 = vmatpush1.msra.mxu0 0.0
    %118 = vmatprep.subr.mxu0 0.0
    %119 = vmatpush1.msra.mxu0 0.0
    %120 = vmatprep.subr.mxu0 0.0
    %121 = vmatpush1.msra.mxu0 0.0
    %122 = vmatprep.subr.mxu0 0.0
    %123 = vmatpush1.msra.mxu0 0.0
    %124 = vmatprep.subr.mxu0 0.0
    %125 = vmatpush1.msra.mxu0 0.0
    %126 = vmatprep.subr.mxu0 0.0
    %127 = vmatpush1.msra.mxu0 0.0
    %128 = vmatprep.subr.mxu0 0.0
    %129 = vmatpush1.msra.mxu0 0.0
    %130 = vmatprep.subr.mxu0 0.0
    %131 = vmatpush1.msra.mxu0 0.0
    %132 = vmatprep.subr.mxu0 0.0
    %133 = vmatpush1.msra.mxu0 0.0
    %134 = vmatprep.subr.mxu0 0.0
    %135 = vmatpush1.msra.mxu0 0.0
    %136 = vmatprep.subr.mxu0 0.0
    %137 = vmatpush1.msra.mxu0 0.0
    %138 = vmatprep.subr.mxu0 0.0
    %139 = vmatpush1.msra.mxu0 0.0
    %140 = vmatprep.subr.mxu0 0.0
    %141 = vmatpush1.msra.mxu0 0.0
    %142 = vmatprep.subr.mxu0 0.0
    %143 = vmatpush1.msra.mxu0 0.0
    %144 = vmatprep.mubr.f32.mxu0 0.0
    %145 = vmatmul.mubr.f32.gmra.mrb[0].mxu0 %v63
    %v146 = vpop.f32.mrb[0].mxu0
    %v147 = vadd.f32 0.0, %v146
    %v148 = vpop.f32.mrb[0].mxu0
    %149 = vdwg.mxu0
    %v150 = vadd.f32 %v62, %v147
    %151 = vst [vmem:[#allocation2] sm:$0xff] %v150
    // Predicated region
    $region34: #{tpu_custom_call.1} parent=1 // pred_check
      %p152 = pneg %p57
    $region35: #{tpu_custom_call.1} parent=1 // pred_check_branch
      %154 = sbr.rel (%p152) target = $region37
    $region36: #{tpu_custom_call.1} parent=1 // pred_region
      %v155 = vld [vmem:[#allocation2] sm:$0xff]
      %v156 = vld [vmem:[#allocation8] sm:$0xff]
      %v157 = vld [vmem:[#allocation8 + $0x8] sm:$0xff]
      %v158 = vld [vmem:[#allocation8 + $0x10] sm:$0xff]
      %v159 = vld [vmem:[#allocation8 + $0x18] sm:$0xff]
      %v160 = vld [vmem:[#allocation8 + $0x20] sm:$0xff]
      %v161 = vld [vmem:[#allocation8 + $0x28] sm:$0xff]
      %v162 = vld [vmem:[#allocation8 + $0x30] sm:$0xff]
      %v163 = vld [vmem:[#allocation8 + $0x38] sm:$0xff]
      %v164 = vld [vmem:[#allocation8 + $0x40] sm:$0xff]
      %v165 = vld [vmem:[#allocation8 + $0x48] sm:$0xff]
      %v166 = vld [vmem:[#allocation8 + $0x50] sm:$0xff]
      %v167 = vld [vmem:[#allocation8 + $0x58] sm:$0xff]
      %v168 = vld [vmem:[#allocation8 + $0x60] sm:$0xff]
      %v169 = vld [vmem:[#allocation8 + $0x68] sm:$0xff]
      %v170 = vld [vmem:[#allocation8 + $0x70] sm:$0xff]
      %v171 = vld [vmem:[#allocation8 + $0x78] sm:$0xff]
      %v172 = vld [vmem:[%s3] sm:$0x1]
      %v174 = vlaneseq
      %v175 = vshrl.u32 %v174, 7
      %v176 = vsub.s32 0, %v175
      %v177 = vrot.slane %v172, %v176
      %179 = vmatprep.subr.mxu0 0.0
      %180 = vmatpush1.msra.mxu0 %v156
      %181 = vmatprep.subr.mxu0 0.0
      %182 = vmatpush1.msra.mxu0 %v157
      %183 = vmatprep.subr.mxu0 0.0
      %184 = vmatpush1.msra.mxu0 %v158
      %185 = vmatprep.subr.mxu0 0.0
      %186 = vmatpush1.msra.mxu0 %v159
      %187 = vmatprep.subr.mxu0 0.0
      %188 = vmatpush1.msra.mxu0 %v160
      %189 = vmatprep.subr.mxu0 0.0
      %190 = vmatpush1.msra.mxu0 %v161
      %191 = vmatprep.subr.mxu0 0.0
      %192 = vmatpush1.msra.mxu0 %v162
      %193 = vmatprep.subr.mxu0 0.0
      %194 = vmatpush1.msra.mxu0 %v163
      %195 = vmatprep.subr.mxu0 0.0
      %196 = vmatpush1.msra.mxu0 %v164
      %197 = vmatprep.subr.mxu0 0.0
      %198 = vmatpush1.msra.mxu0 %v165
      %199 = vmatprep.subr.mxu0 0.0
      %200 = vmatpush1.msra.mxu0 %v166
      %201 = vmatprep.subr.mxu0 0.0
      %202 = vmatpush1.msra.mxu0 %v167
      %203 = vmatprep.subr.mxu0 0.0
      %204 = vmatpush1.msra.mxu0 %v168
      %205 = vmatprep.subr.mxu0 0.0
      %206 = vmatpush1.msra.mxu0 %v169
      %207 = vmatprep.subr.mxu0 0.0
      %208 = vmatpush1.msra.mxu0 %v170
      %209 = vmatprep.subr.mxu0 0.0
      %210 = vmatpush1.msra.mxu0 %v171
      %211 = vmatprep.subr.mxu0 0.0
      %212 = vmatpush1.msra.mxu0 0.0
      %213 = vmatprep.subr.mxu0 0.0
      %214 = vmatpush1.msra.mxu0 0.0
      %215 = vmatprep.subr.mxu0 0.0
      %216 = vmatpush1.msra.mxu0 0.0
      %217 = vmatprep.subr.mxu0 0.0
      %218 = vmatpush1.msra.mxu0 0.0
      %219 = vmatprep.subr.mxu0 0.0
      %220 = vmatpush1.msra.mxu0 0.0
      %221 = vmatprep.subr.mxu0 0.0
      %222 = vmatpush1.msra.mxu0 0.0
      %223 = vmatprep.subr.mxu0 0.0
      %224 = vmatpush1.msra.mxu0 0.0
      %225 = vmatprep.subr.mxu0 0.0
      %226 = vmatpush1.msra.mxu0 0.0
      %227 = vmatprep.subr.mxu0 0.0
      %228 = vmatpush1.msra.mxu0 0.0
      %229 = vmatprep.subr.mxu0 0.0
      %230 = vmatpush1.msra.mxu0 0.0
      %231 = vmatprep.subr.mxu0 0.0
      %232 = vmatpush1.msra.mxu0 0.0
      %233 = vmatprep.subr.mxu0 0.0
      %234 = vmatpush1.msra.mxu0 0.0
      %235 = vmatprep.subr.mxu0 0.0
      %236 = vmatpush1.msra.mxu0 0.0
      %237 = vmatprep.subr.mxu0 0.0
      %238 = vmatpush1.msra.mxu0 0.0
      %239 = vmatprep.subr.mxu0 0.0
      %240 = vmatpush1.msra.mxu0 0.0
      %241 = vmatprep.subr.mxu0 0.0
      %242 = vmatpush1.msra.mxu0 0.0
      %243 = vmatprep.mubr.f32.mxu0 0.0
      %244 = vmatmul.mubr.f32.gmra.mrb[0].mxu0 %v155
      %v245 = vpop.f32.mrb[0].mxu0
      %v246 = vadd.f32 %v177, %v245
      %v247 = vpop.f32.mrb[0].mxu0
      %248 = vdwg.mxu0
      %249 = vst [vmem:[#allocation9] sm:$0xff] %v246
    $region37: #{tpu_custom_call.1} parent=1 // pred_fallthru
      _
    // Predicated region
    $region38: #{tpu_custom_call.1} parent=1 // pred_check
      _
    $region39: #{tpu_custom_call.1} parent=1 // pred_check_branch
      %251 = sbr.rel (0) target = $region41
    $region40: #{tpu_custom_call.1} parent=1 // pred_region
      %s253 = ssub.s32 128, 128
      %254 = vsyncadd [#allocation5], %s253
      %s256 = sshll.u32 [#allocation9], 4
      %s257 = int_to_ptr.vmem [resolvable:$true] %s256
      %259 = dma.vmem_to_hbm [thread:$0]  %s257, 128, %s4, [#allocation5]
    $region41: #{tpu_custom_call.1} parent=1 // pred_fallthru
      _
    // Predicated region
    $region42: #{tpu_custom_call.1} parent=1 // pred_check
      _
    $region43: #{tpu_custom_call.1} parent=1 // pred_check_branch
      %261 = sbr.rel (0) target = $region45
    $region44: #{tpu_custom_call.1} parent=1 // pred_region
      %262 = dma.done [#allocation5], 128
    $region45: #{tpu_custom_call.1} parent=1 // pred_fallthru
      _
    %263 = vsyncpa [#allocation4], 1
    %264 = vsyncpa [#allocation7], 1
    %265 = vsyncpa [#allocation5], 1

</llo_original>
